<compile_context>
chip_gen: v6e
topology: v6e:2x2x1
jax: 0.10.0
libtpu: 0.0.40
codegen_flags: <defaults>
</compile_context>

<pallas_src>
import functools

import jax
import jax.numpy as jnp
from jax import lax
from jax.experimental import pallas as pl
from jax.experimental.pallas import tpu as pltpu


# ---------------------------------------------------------------------------
# Configuration
# ---------------------------------------------------------------------------
_MAX_ONEHOT_TILE = 256      # batch rows per grid step on the VMEM-resident path
_MAX_GATHER_TILE = 128      # batch rows per grid step on the HBM-gather path
_GATHER_SUB_TILE = 32       # rows per double-buffered DMA sub-tile
_MIN_GRID_STEPS = 4         # aim for >= this many grid steps (megacore/pipeline)
_TRAFFIC_FACTOR = 16        # resident path allowed if table bytes <= 16x useful bytes
_SMALL_TABLE_BYTES = 2 << 20  # ...or if the tables are tiny in absolute terms


def _round_up(x, m):
    return (x + m - 1) // m * m


@functools.lru_cache(maxsize=None)
def _vmem_budget_and_limit():
    """Generation-gated VMEM budget/limit (v7x has 64 MiB, v5e/v6e 128 MiB)."""
    cap = 64 * 1024 * 1024                       # conservative default (v7x)
    try:
        info = pltpu.get_tpu_info()
        cap = int(getattr(info, "vmem_capacity_bytes", cap)) or cap
    except Exception:
        pass
    budget = min(cap // 3, 48 * 1024 * 1024)     # resident-table path footprint cap
    limit = min(cap // 2, 96 * 1024 * 1024)      # scoped vmem limit for Mosaic
    return budget, limit


# ---------------------------------------------------------------------------
# Path 1: tables resident in VMEM, batched one-hot MXU gather
# ---------------------------------------------------------------------------
def _onehot_dot_kernel(ctx_idx_ref, word_idx_ref, ctx_tab_ref, word_tab_ref,
                       o_ref):
    tm = ctx_idx_ref.shape[0]
    vc = ctx_tab_ref.shape[0]
    vw = word_tab_ref.shape[0]
    tab_dtype = ctx_tab_ref.dtype

    ci = ctx_idx_ref[...]                       # (tm, 1) int32
    wi = word_idx_ref[...]                      # (tm, 1) int32

    # One-hot selection matrices (tm, V): row b has a 1 at column idx[b].
    oh_c = (lax.broadcasted_iota(jnp.int32, (tm, vc), 1) == ci).astype(tab_dtype)
    oh_w = (lax.broadcasted_iota(jnp.int32, (tm, vw), 1) == wi).astype(tab_dtype)

    # HIGHEST -> exact-f32 MXU contraction (default precision would round the
    # gathered table rows toward bf16).
    ctx_vec = jnp.dot(oh_c, ctx_tab_ref[...],
                      preferred_element_type=jnp.float32,
                      precision=lax.Precision.HIGHEST)        # (tm, D)
    word_vec = jnp.dot(oh_w, word_tab_ref[...],
                       preferred_element_type=jnp.float32,
                       precision=lax.Precision.HIGHEST)       # (tm, D)

    prod = ctx_vec * word_vec                                  # (tm, D) f32
    # Lane-dense (1, 1, tm) store instead of a sublane-major (tm, 1) column.
    o_ref[...] = jnp.sum(prod, axis=-1)[None, None, :].astype(o_ref.dtype)


def _embedding_dot_onehot(ctx_idx, word_idx, ctx_table, word_table):
    B = ctx_idx.shape[0]
    Vc, D = ctx_table.shape
    Vw, _ = word_table.shape

    tile_m = min(_MAX_ONEHOT_TILE, _round_up(B, 8))
    b_pad = _round_up(B, tile_m)
    grid_m = b_pad // tile_m
    if b_pad != B:
        pad = b_pad - B
        ctx_idx = jnp.concatenate([ctx_idx, jnp.zeros((pad,), jnp.int32)])
        word_idx = jnp.concatenate([word_idx, jnp.zeros((pad,), jnp.int32)])

    _, vmem_limit = _vmem_budget_and_limit()

    out = pl.pallas_call(
        _onehot_dot_kernel,
        out_shape=jax.ShapeDtypeStruct((grid_m, 1, tile_m), jnp.float32),
        grid_spec=pltpu.PrefetchScalarGridSpec(
            num_scalar_prefetch=0,
            grid=(grid_m,),
            in_specs=[
                pl.BlockSpec((tile_m, 1), lambda i: (i, 0)),   # ctx indices
                pl.BlockSpec((tile_m, 1), lambda i: (i, 0)),   # word indices
                pl.BlockSpec((Vc, D), lambda i: (0, 0)),       # ctx table (resident)
                pl.BlockSpec((Vw, D), lambda i: (0, 0)),       # word table (resident)
            ],
            out_specs=pl.BlockSpec((1, 1, tile_m), lambda i: (i, 0, 0)),
        ),
        compiler_params=pltpu.CompilerParams(
            dimension_semantics=("parallel",),
            vmem_limit_bytes=vmem_limit),
    )(ctx_idx.reshape(b_pad, 1), word_idx.reshape(b_pad, 1),
      ctx_table, word_table)
    return out.reshape(b_pad)[:B].reshape(B, 1)


# ---------------------------------------------------------------------------
# Path 2: tables in HBM, double-buffered batched row-gather
# ---------------------------------------------------------------------------
def _gather_dot_kernel(ctx_idx_ref, word_idx_ref,   # scalar prefetch (SMEM)
                       ctx_hbm, word_hbm,           # tables (HBM, pl.ANY)
                       o_ref,                       # (1, 1, tile_rows) output block
                       ctx_buf, word_buf, sem,      # scratch
                       *, tile_rows, sub_rows):
    t = pl.program_id(0)
    base = t * tile_rows
    n_sub = tile_rows // sub_rows

    def start_sub_tile(s, slot):
        """Issue the 2*sub_rows row-gather DMAs of sub-tile `s` into `slot`."""
        row0 = base + s * sub_rows
        copies = []
        for r in range(sub_rows):
            ci = ctx_idx_ref[row0 + r]
            wi = word_idx_ref[row0 + r]
            cc = pltpu.make_async_copy(ctx_hbm.at[pl.ds(ci, 1)],
                                       ctx_buf.at[slot].at[pl.ds(r, 1)],
                                       sem.at[slot, 0])
            wc = pltpu.make_async_copy(word_hbm.at[pl.ds(wi, 1)],
                                       word_buf.at[slot].at[pl.ds(r, 1)],
                                       sem.at[slot, 1])
            cc.start()
            wc.start()
            copies.append(cc)
            copies.append(wc)
        return copies

    # Prime sub-tile 0, then: issue sub-tile s+1's DMAs *before* waiting on
    # sub-tile s, alternating VMEM slots -> the DMA engine stays busy.
    pending = start_sub_tile(0, 0)
    for s in range(n_sub):                       # unrolled (n_sub is static)
        slot = s & 1
        nxt = start_sub_tile(s + 1, (s + 1) & 1) if s + 1 < n_sub else None
        for cp in pending:                       # wait the descriptors we started
            cp.wait()
        # Cast to f32 *before* the multiply (exact f32 semantics even for
        # lower-precision tables), f32 row-reduce, lane-dense partial store.
        prod = (ctx_buf[slot].astype(jnp.float32)
                * word_buf[slot].astype(jnp.float32))          # (sub_rows, D)
        sums = jnp.sum(prod, axis=-1)                          # (sub_rows,)
        o_ref[:, :, s * sub_rows:(s + 1) * sub_rows] = (
            sums[None, None, :].astype(o_ref.dtype))
        pending = nxt


def _embedding_dot_gather(ctx_idx, word_idx, ctx_table, word_table):
    B = ctx_idx.shape[0]
    _, D = ctx_table.shape

    # Rows per grid step: large enough to amortize the ~0.35 us per-step
    # pipeline overhead, small enough that the grid has >= _MIN_GRID_STEPS
    # steps (so "parallel" actually uses both v7x TensorCores).
    b_pad8 = _round_up(B, 8)
    tile_rows = min(_MAX_GATHER_TILE,
                    max(8, _round_up(pl.cdiv(b_pad8, _MIN_GRID_STEPS), 8)))
    # Double-buffered sub-tile size (must divide tile_rows, which is 8-aligned).
    sub_rows = next(c for c in (_GATHER_SUB_TILE, 16, 8, tile_rows)
                    if tile_rows % c == 0)

    b_pad = _round_up(B, tile_rows)
    grid = b_pad // tile_rows
    if b_pad != B:
        pad = b_pad - B
        ctx_idx = jnp.concatenate([ctx_idx, jnp.zeros((pad,), jnp.int32)])
        word_idx = jnp.concatenate([word_idx, jnp.zeros((pad,), jnp.int32)])

    kernel = functools.partial(_gather_dot_kernel,
                               tile_rows=tile_rows, sub_rows=sub_rows)

    grid_spec = pltpu.PrefetchScalarGridSpec(
        num_scalar_prefetch=2,                    # ctx_idx, word_idx -> SMEM
        grid=(grid,),
        in_specs=[
            pl.BlockSpec(memory_space=pl.ANY),    # ctx table stays in HBM
            pl.BlockSpec(memory_space=pl.ANY),    # word table stays in HBM
        ],
        # Disjoint lane-dense (1, 1, tile_rows) block per step.
        out_specs=pl.BlockSpec((1, 1, tile_rows), lambda t, ci, wi: (t, 0, 0)),
        scratch_shapes=[
            pltpu.VMEM((2, sub_rows, D), ctx_table.dtype),   # double buffer
            pltpu.VMEM((2, sub_rows, D), word_table.dtype),  # double buffer
            pltpu.SemaphoreType.DMA((2, 2)),                 # [slot, table]
        ],
    )

    out = pl.pallas_call(
        kernel,
        out_shape=jax.ShapeDtypeStruct((grid, 1, tile_rows), jnp.float32),
        grid_spec=grid_spec,
        compiler_params=pltpu.CompilerParams(
            dimension_semantics=("parallel",)),
    )(ctx_idx, word_idx, ctx_table, word_table)
    return out.reshape(b_pad)[:B].reshape(B, 1)


# ---------------------------------------------------------------------------
# Public wrapper (forward pass of MyNetwork)
# ---------------------------------------------------------------------------
def embedding_dot(ctx_idx, word_idx, ctx_table, word_table, *,
                  force_gather=False):
    """Pallas equivalent of MyNetwork.forward(ctx, word) -> (B, 1) float32."""
    assert ctx_idx.shape == word_idx.shape and ctx_idx.ndim == 1
    B = ctx_idx.shape[0]
    Vc, D = ctx_table.shape
    Vw, D2 = word_table.shape
    assert D == D2

    ctx_idx = ctx_idx.astype(jnp.int32)
    word_idx = word_idx.astype(jnp.int32)

    itemsize = ctx_table.dtype.itemsize
    table_bytes = (Vc + Vw) * D * itemsize          # HBM traffic of resident path
    useful_bytes = 2 * B * D * itemsize             # bytes actually needed

    budget, _ = _vmem_budget_and_limit()
    tile_m = min(_MAX_ONEHOT_TILE, _round_up(B, 8))
    est_vmem = (2 * table_bytes                         # double-buffered tables
                + tile_m * (Vc + Vw) * (itemsize + 4)   # one-hot + iota scratch
                + 3 * tile_m * D * 4                    # gathered rows + product
                + (2 << 20))                            # Mosaic internal headroom

    traffic_ok = table_bytes <= max(_TRAFFIC_FACTOR * useful_bytes,
                                    _SMALL_TABLE_BYTES)
    if (not force_gather) and traffic_ok and est_vmem <= budget:
        return _embedding_dot_onehot(ctx_idx, word_idx, ctx_table, word_table)
    return _embedding_dot_gather(ctx_idx, word_idx, ctx_table, word_table)


def _xavier_normal(key, shape):
    # nn.Embedding weight is (num_embeddings, embed_dim): fan_out, fan_in.
    fan_out, fan_in = shape
    std = (2.0 / (fan_in + fan_out)) ** 0.5
    return std * jax.random.normal(key, shape, dtype=jnp.float32)


if __name__ == "__main__":
    key = jax.random.PRNGKey(0)

    # --- Case 1: MyNetwork demo sizes -> VMEM-resident one-hot path. -------
    vocab_ctx, vocab_word, embed_dim, batch = 64, 96, 128, 8
    k1, k2, k3, k4, key = jax.random.split(key, 5)
    ctx_table = _xavier_normal(k1, (vocab_ctx, embed_dim))
    word_table = _xavier_normal(k2, (vocab_word, embed_dim))
    ctx = jax.random.randint(k3, (batch,), 0, vocab_ctx, dtype=jnp.int32)
    word = jax.random.randint(k4, (batch,), 0, vocab_word, dtype=jnp.int32)

    ref = jnp.sum(ctx_table[ctx] * word_table[word], axis=1, keepdims=True)
    out = jax.block_until_ready(embedding_dot(ctx, word, ctx_table, word_table))
    assert out.shape == (batch, 1)
    assert jnp.allclose(out, ref, atol=1e-4, rtol=1e-4), "one-hot path mismatch"

    # --- Case 2: larger batch forced through the HBM-gather path (exercises
    # the multi-step grid + double-buffered DMA sub-tiles + padding). --------
    vocab_ctx2, vocab_word2, batch2 = 512, 768, 80
    k1, k2, k3, k4, key = jax.random.split(key, 5)
    ctx_table2 = _xavier_normal(k1, (vocab_ctx2, embed_dim))
    word_table2 = _xavier_normal(k2, (vocab_word2, embed_dim))
    ctx2 = jax.random.randint(k3, (batch2,), 0, vocab_ctx2, dtype=jnp.int32)
    word2 = jax.random.randint(k4, (batch2,), 0, vocab_word2, dtype=jnp.int32)

    ref2 = jnp.sum(ctx_table2[ctx2] * word_table2[word2], axis=1, keepdims=True)
    out2 = jax.block_until_ready(
        embedding_dot(ctx2, word2, ctx_table2, word_table2, force_gather=True))
    assert out2.shape == (batch2, 1)
    assert jnp.allclose(out2, ref2, atol=1e-5, rtol=1e-5), "gather path mismatch"

    # Also run the small case through the gather path (single-tile degenerate case).
    out_g = jax.block_until_ready(
        embedding_dot(ctx, word, ctx_table, word_table, force_gather=True))
    assert jnp.allclose(out_g, ref, atol=1e-5, rtol=1e-5), "gather path mismatch (small)"

    print("KERNEL_OK")
</pallas_src>

<mosaic_0001>
module attributes {stable_mosaic.version = 11 : i64} {
  func.func @_onehot_dot_kernel(%arg0: i32, %arg1: memref<8x1xi32, #tpu.memory_space<vmem>>, %arg2: memref<8x1xi32, #tpu.memory_space<vmem>>, %arg3: memref<64x128xf32, #tpu.memory_space<vmem>>, %arg4: memref<96x128xf32, #tpu.memory_space<vmem>>, %arg5: memref<1x1x8xf32, #tpu.memory_space<vmem>>) attributes {dimension_semantics = [#tpu.dimension_semantics<parallel>], iteration_bounds = array<i64: 1>, scalar_prefetch = 0 : i64, scratch_operands = 0 : i64, tpu.core_type = #tpu.core_type<tc>, window_params = [{transform_indices = @transform_0, window_bounds = array<i64: 8, 1>}, {transform_indices = @transform_1, window_bounds = array<i64: 8, 1>}, {pipeline_mode = #tpu.pipeline_mode<synchronous>, transform_indices = @transform_2, window_bounds = array<i64: 64, 128>}, {pipeline_mode = #tpu.pipeline_mode<synchronous>, transform_indices = @transform_3, window_bounds = array<i64: 96, 128>}, {transform_indices = @transform_4, window_bounds = array<i64: 1, 1, 8>}]} {
    %c0 = arith.constant 0 : index
    %c0_0 = arith.constant 0 : index
    %0 = vector.load %arg1[%c0, %c0_0] : memref<8x1xi32, #tpu.memory_space<vmem>>, vector<8x1xi32>
    %c0_1 = arith.constant 0 : index
    %c0_2 = arith.constant 0 : index
    %1 = vector.load %arg2[%c0_1, %c0_2] : memref<8x1xi32, #tpu.memory_space<vmem>>, vector<8x1xi32>
    %2 = tpu.iota {dimensions = array<i32: 1>} : vector<8x64xi32>
    %3 = vector.broadcast %0 : vector<8x1xi32> to vector<8x64xi32>
    %4 = arith.cmpi eq, %2, %3 : vector<8x64xi32>
    %5 = arith.extui %4 : vector<8x64xi1> to vector<8x64xi32>
    %6 = arith.sitofp %5 : vector<8x64xi32> to vector<8x64xf32>
    %7 = tpu.iota {dimensions = array<i32: 1>} : vector<8x96xi32>
    %8 = vector.broadcast %1 : vector<8x1xi32> to vector<8x96xi32>
    %9 = arith.cmpi eq, %7, %8 : vector<8x96xi32>
    %10 = arith.extui %9 : vector<8x96xi1> to vector<8x96xi32>
    %11 = arith.sitofp %10 : vector<8x96xi32> to vector<8x96xf32>
    %c0_3 = arith.constant 0 : index
    %c0_4 = arith.constant 0 : index
    %12 = vector.load %arg3[%c0_3, %c0_4] : memref<64x128xf32, #tpu.memory_space<vmem>>, vector<64x128xf32>
    %cst = arith.constant dense<0.000000e+00> : vector<8x128xf32>
    %13 = tpu.matmul %6, %12, %cst {dimension_numbers = #tpu.dot_dimension_numbers<[1], [0], [0], [1], [0, 0, 1, 1], [], []>, precision = #tpu.contract_precision<fp32>} : vector<8x64xf32>, vector<64x128xf32>, vector<8x128xf32> -> vector<8x128xf32>
    %c0_5 = arith.constant 0 : index
    %c0_6 = arith.constant 0 : index
    %14 = vector.load %arg4[%c0_5, %c0_6] : memref<96x128xf32, #tpu.memory_space<vmem>>, vector<96x128xf32>
    %cst_7 = arith.constant dense<0.000000e+00> : vector<8x128xf32>
    %15 = tpu.matmul %11, %14, %cst_7 {dimension_numbers = #tpu.dot_dimension_numbers<[1], [0], [0], [1], [0, 0, 1, 1], [], []>, precision = #tpu.contract_precision<fp32>} : vector<8x96xf32>, vector<96x128xf32>, vector<8x128xf32> -> vector<8x128xf32>
    %16 = arith.mulf %13, %15 : vector<8x128xf32>
    %cst_8 = arith.constant dense<0.000000e+00> : vector<8xf32>
    %17 = vector.multi_reduction <add>, %16, %cst_8 [1] : vector<8x128xf32> to vector<8xf32>
    %18 = vector.shape_cast %17 : vector<8xf32> to vector<1x1x8xf32>
    %c0_9 = arith.constant 0 : index
    %c0_10 = arith.constant 0 : index
    %c0_11 = arith.constant 0 : index
    %19 = vector.load %arg5[%c0_9, %c0_10, %c0_11] : memref<1x1x8xf32, #tpu.memory_space<vmem>>, vector<1x1x8xf32>
    tpu.vector_store %arg5[%c0_9, %c0_10, %c0_11], %18 {strides = array<i32>} : memref<1x1x8xf32, #tpu.memory_space<vmem>>, vector<1x1x8xf32>,
    return
  }
  func.func @transform_0(%arg0: i32) -> (i32, i32) {
    %c0_i32 = arith.constant 0 : i32
    %c0_i32_0 = arith.constant 0 : i32
    return %arg0, %c0_i32 : i32, i32
  }
  func.func @transform_1(%arg0: i32) -> (i32, i32) {
    %c0_i32 = arith.constant 0 : i32
    %c0_i32_0 = arith.constant 0 : i32
    return %arg0, %c0_i32 : i32, i32
  }
  func.func @transform_2(%arg0: i32) -> (i32, i32) {
    %c0_i32 = arith.constant 0 : i32
    %c0_i32_0 = arith.constant 0 : i32
    %c0_i32_1 = arith.constant 0 : i32
    return %c0_i32, %c0_i32_0 : i32, i32
  }
  func.func @transform_3(%arg0: i32) -> (i32, i32) {
    %c0_i32 = arith.constant 0 : i32
    %c0_i32_0 = arith.constant 0 : i32
    %c0_i32_1 = arith.constant 0 : i32
    return %c0_i32, %c0_i32_0 : i32, i32
  }
  func.func @transform_4(%arg0: i32) -> (i32, i32, i32) {
    %c0_i32 = arith.constant 0 : i32
    %c0_i32_0 = arith.constant 0 : i32
    %c0_i32_1 = arith.constant 0 : i32
    return %arg0, %c0_i32, %c0_i32_0 : i32, i32, i32
  }
}

</mosaic_0001>

<llo_original>
// kernel: tpu_custom_call.1
$region0: #{tpu_custom_call.1}
  #allocation0 [shape = 'u32[]', space=smem, size = 0x4, offset = 0x4, fixed_abs, tag = 'smem constant byte address 0x4 - core index']
  #allocation1 [shape = 'u32[144,128]{1,0:T(1,128)}', space=vmem, size = 0x12000, scoped, tag = 'internal scratch']
  %s0 = inlined_call_operand.vmem [shape: s32[8,1], index: 0, kind: input, shape index: {}]
  %s1 = inlined_call_operand.vmem [shape: s32[8,1], index: 1, kind: input, shape index: {}]
  %s2 = inlined_call_operand.hbm [shape: f32[64,128], index: 2, kind: input, shape index: {}]
  %s3 = inlined_call_operand.hbm [shape: f32[96,128], index: 3, kind: input, shape index: {}]
  %s4 = inlined_call_operand.hbm [shape: f32[1,1,8], index: 4, kind: output, shape index: {}]
  %s5 = sld [smem:[#allocation0]]
  $region34: #{tpu_custom_call.1} parent=0
    _
  %s7 = ssub.s32 1, %s5
  %s8 = scalar_select 0, %s7, %s5
  $region1: #{tpu_custom_call.1} parent=0
    #allocation2 [shape = 'u8[32768]{0}', space=vmem, size = 0x8000, scoped, tag = 'input window, operand 2, single buffered']
    #allocation3 [shape = 's32[1]{0}', space=sflag, size = 0x4, scoped, tag = 'scoped memory for tpu_custom_call.1']
    #allocation4 [shape = 's32[1]{0}', space=sflag, size = 0x4, scoped, tag = 'scoped memory for tpu_custom_call.1']
    #allocation5 [shape = 'u8[49152]{0}', space=vmem, size = 0xc000, scoped, tag = 'input window, operand 3, single buffered']
    #allocation6 [shape = 's32[1]{0}', space=sflag, size = 0x4, scoped, tag = 'scoped memory for tpu_custom_call.1']
    #allocation7 [shape = 'u8[512]{0}', space=vmem, size = 0x400, scoped, tag = 'output window, operand 0, single buffered']
    %9 = vsyncpa [#allocation3], 0
    %10 = vsyncpa [#allocation6], 0
    %11 = vsyncpa [#allocation4], 0
    // Predicated region
    $region2: #{tpu_custom_call.1} parent=1 // pred_check
      _
    $region3: #{tpu_custom_call.1} parent=1 // pred_check_branch
      %13 = sbr.rel (0) target = $region5
    $region4: #{tpu_custom_call.1} parent=1 // pred_region
      _
    $region5: #{tpu_custom_call.1} parent=1 // pred_fallthru
      _
    // Predicated region
    $region6: #{tpu_custom_call.1} parent=1 // pred_check
      _
    $region7: #{tpu_custom_call.1} parent=1 // pred_check_branch
      %15 = sbr.rel (0) target = $region9
    $region8: #{tpu_custom_call.1} parent=1 // pred_region
      _
    $region9: #{tpu_custom_call.1} parent=1 // pred_fallthru
      _
    // Predicated region
    $region10: #{tpu_custom_call.1} parent=1 // pred_check
      _
    $region11: #{tpu_custom_call.1} parent=1 // pred_check_branch
      %17 = sbr.rel (0) target = $region13
    $region12: #{tpu_custom_call.1} parent=1 // pred_region
      %s19 = ssub.s32 1024, 1024
      %20 = vsyncadd [#allocation3], %s19
      %s21 = sshll.u32 [#allocation2], 4
      %s22 = int_to_ptr.vmem [resolvable:$true] %s21
      %27 = dma.hbm_to_vmem [thread:$0]  %s2, 1024, %s22, [#allocation3], 128, 128, 8
    $region13: #{tpu_custom_call.1} parent=1 // pred_fallthru
      _
    // Predicated region
    $region14: #{tpu_custom_call.1} parent=1 // pred_check
      _
    $region15: #{tpu_custom_call.1} parent=1 // pred_check_branch
      %29 = sbr.rel (0) target = $region17
    $region16: #{tpu_custom_call.1} parent=1 // pred_region
      %s31 = ssub.s32 1536, 1536
      %32 = vsyncadd [#allocation6], %s31
      %s33 = sshll.u32 [#allocation5], 4
      %s34 = int_to_ptr.vmem [resolvable:$true] %s33
      %39 = dma.hbm_to_vmem [thread:$0]  %s3, 1536, %s34, [#allocation6], 128, 128, 8
    $region17: #{tpu_custom_call.1} parent=1 // pred_fallthru
      _
    // Predicated region
    $region18: #{tpu_custom_call.1} parent=1 // pred_check
      _
    $region19: #{tpu_custom_call.1} parent=1 // pred_check_branch
      %41 = sbr.rel (0) target = $region21
    $region20: #{tpu_custom_call.1} parent=1 // pred_region
      %42 = dma.done [#allocation3], 1024
    $region21: #{tpu_custom_call.1} parent=1 // pred_fallthru
      _
    // Predicated region
    $region22: #{tpu_custom_call.1} parent=1 // pred_check
      _
    $region23: #{tpu_custom_call.1} parent=1 // pred_check_branch
      %44 = sbr.rel (0) target = $region25
    $region24: #{tpu_custom_call.1} parent=1 // pred_region
      %45 = dma.done [#allocation6], 1536
    $region25: #{tpu_custom_call.1} parent=1 // pred_fallthru
      _
    %v46 = vld [vmem:[%s0] sm:$0xff]
    %v47 = vld [vmem:[%s1] sm:$0xff]
    %v48 = vlaneseq
    %v49 = vand.u32 %v48, 127
    %50 = vset.pattern.permute.xlu0 0
    %51 = vperm.xlu0 %50, %v46
    %v52 = vpop.permute.xlu0 %51
    %vm53 = vcmp.eq.s32.totalorder %v49, %v52
    %v54 = vsel %vm53, 1, 0
    %v55 = vcvt.s32.f32 %v54
    %56 = vset.pattern.permute.xlu0 0
    %57 = vperm.xlu0 %56, %v47
    %v58 = vpop.permute.xlu0 %57
    %vm59 = vcmp.eq.s32.totalorder %v49, %v58
    %v60 = vsel %vm59, 1, 0
    %v61 = vcvt.s32.f32 %v60
    %v62 = vld [vmem:[#allocation2] sm:$0xff]
    %v63 = vld [vmem:[#allocation2 + $0x8] sm:$0xff]
    %v64 = vld [vmem:[#allocation2 + $0x10] sm:$0xff]
    %v65 = vld [vmem:[#allocation2 + $0x18] sm:$0xff]
    %v66 = vld [vmem:[#allocation2 + $0x20] sm:$0xff]
    %v67 = vld [vmem:[#allocation2 + $0x28] sm:$0xff]
    %v68 = vld [vmem:[#allocation2 + $0x30] sm:$0xff]
    %v69 = vld [vmem:[#allocation2 + $0x38] sm:$0xff]
    %vm70 = vcmask 523264
    %v72 = vsel %vm70, %v55, 0
    %74 = vmatprep.subr.mxu0 0.0
    %75 = vmatpush1.msra.mxu0 0.0
    %76 = vmatprep.subr.mxu0 0.0
    %77 = vmatpush1.msra.mxu0 0.0
    %78 = vmatprep.subr.mxu0 0.0
    %79 = vmatpush1.msra.mxu0 0.0
    %80 = vmatprep.subr.mxu0 0.0
    %81 = vmatpush1.msra.mxu0 0.0
    %82 = vmatprep.subr.mxu0 0.0
    %83 = vmatpush1.msra.mxu0 0.0
    %84 = vmatprep.subr.mxu0 0.0
    %85 = vmatpush1.msra.mxu0 0.0
    %86 = vmatprep.subr.mxu0 0.0
    %87 = vmatpush1.msra.mxu0 0.0
    %88 = vmatprep.subr.mxu0 0.0
    %89 = vmatpush1.msra.mxu0 0.0
    %90 = vmatprep.subr.mxu0 0.0
    %v91 = vand.u32 %v69, 4294901760
    %92 = vmatpush1.msra.mxu0 %v91
    %93 = vmatprep.subr.mxu0 0.0
    %v94 = vand.u32 %v68, 4294901760
    %95 = vmatpush1.msra.mxu0 %v94
    %96 = vmatprep.subr.mxu0 0.0
    %v97 = vand.u32 %v67, 4294901760
    %98 = vmatpush1.msra.mxu0 %v97
    %99 = vmatprep.subr.mxu0 0.0
    %v100 = vand.u32 %v66, 4294901760
    %101 = vmatpush1.msra.mxu0 %v100
    %102 = vmatprep.subr.mxu0 0.0
    %v103 = vand.u32 %v65, 4294901760
    %104 = vmatpush1.msra.mxu0 %v103
    %105 = vmatprep.subr.mxu0 0.0
    %v106 = vand.u32 %v64, 4294901760
    %107 = vmatpush1.msra.mxu0 %v106
    %108 = vmatprep.subr.mxu0 0.0
    %v109 = vand.u32 %v63, 4294901760
    %110 = vmatpush1.msra.mxu0 %v109
    %111 = vmatprep.subr.mxu0 0.0
    %v112 = vand.u32 %v62, 4294901760
    %113 = vmatpush1.msra.mxu0 %v112
    %114 = vmatprep.subr.mxu0 0.0
    %115 = vmatpush2.msra.mxu0 0.0
    %116 = vmatprep.subr.mxu0 0.0
    %117 = vmatpush2.msra.mxu0 0.0
    %118 = vmatprep.subr.mxu0 0.0
    %119 = vmatpush2.msra.mxu0 0.0
    %120 = vmatprep.subr.mxu0 0.0
    %121 = vmatpush2.msra.mxu0 0.0
    %122 = vmatprep.subr.mxu0 0.0
    %123 = vmatpush2.msra.mxu0 0.0
    %124 = vmatprep.subr.mxu0 0.0
    %125 = vmatpush2.msra.mxu0 0.0
    %126 = vmatprep.subr.mxu0 0.0
    %127 = vmatpush2.msra.mxu0 0.0
    %128 = vmatprep.subr.mxu0 0.0
    %129 = vmatpush2.msra.mxu0 0.0
    %130 = vmatprep.subr.mxu0 0.0
    %131 = vmatpush2.msra.mxu0 0.0
    %132 = vmatprep.subr.mxu0 0.0
    %133 = vmatpush2.msra.mxu0 0.0
    %134 = vmatprep.subr.mxu0 0.0
    %135 = vmatpush2.msra.mxu0 0.0
    %136 = vmatprep.subr.mxu0 0.0
    %137 = vmatpush2.msra.mxu0 0.0
    %138 = vmatprep.subr.mxu0 0.0
    %139 = vmatpush2.msra.mxu0 0.0
    %140 = vmatprep.subr.mxu0 0.0
    %141 = vmatpush2.msra.mxu0 0.0
    %142 = vmatprep.subr.mxu0 0.0
    %143 = vmatpush2.msra.mxu0 0.0
    %144 = vmatprep.subr.mxu0 0.0
    %145 = vmatpush2.msra.mxu0 0.0
    %146 = vmatprep.mubr.f32.mxu0 0.0
    %v147 = vand.u32 %v72, 4294901760
    %v148 = vsub.f32 %v72, %v147
    %v149 = vand.u32 %v148, 4294901760
    %v150 = vsub.f32 %v148, %v149
    %v151 = vand.u32 %v150, 4294901760
    %152 = vmatmul.mubr.f32.gmra.mxu0 %v151
    %v153 = vpop.f32.mrf.mxu0
    %v154 = vadd.f32 0.0, %v153
    %v155 = vpop.f32.mrf.mxu0
    %156 = vdwg.mxu0
    %157 = vmatprep.subr.mxu0 0.0
    %158 = vmatpush1.msra.mxu0 0.0
    %159 = vmatprep.subr.mxu0 0.0
    %160 = vmatpush1.msra.mxu0 0.0
    %161 = vmatprep.subr.mxu0 0.0
    %162 = vmatpush1.msra.mxu0 0.0
    %163 = vmatprep.subr.mxu0 0.0
    %164 = vmatpush1.msra.mxu0 0.0
    %165 = vmatprep.subr.mxu0 0.0
    %166 = vmatpush1.msra.mxu0 0.0
    %167 = vmatprep.subr.mxu0 0.0
    %168 = vmatpush1.msra.mxu0 0.0
    %169 = vmatprep.subr.mxu0 0.0
    %170 = vmatpush1.msra.mxu0 0.0
    %171 = vmatprep.subr.mxu0 0.0
    %172 = vmatpush1.msra.mxu0 0.0
    %173 = vmatprep.subr.mxu0 0.0
    %v174 = vand.u32 %v69, 4294901760
    %v175 = vsub.f32 %v69, %v174
    %v176 = vand.u32 %v175, 4294901760
    %v177 = vsub.f32 %v175, %v176
    %v178 = vand.u32 %v177, 4294901760
    %179 = vmatpush1.msra.mxu0 %v178
    %180 = vmatprep.subr.mxu0 0.0
    %v181 = vand.u32 %v68, 4294901760
    %v182 = vsub.f32 %v68, %v181
    %v183 = vand.u32 %v182, 4294901760
    %v184 = vsub.f32 %v182, %v183
    %v185 = vand.u32 %v184, 4294901760
    %186 = vmatpush1.msra.mxu0 %v185
    %187 = vmatprep.subr.mxu0 0.0
    %v188 = vand.u32 %v67, 4294901760
    %v189 = vsub.f32 %v67, %v188
    %v190 = vand.u32 %v189, 4294901760
    %v191 = vsub.f32 %v189, %v190
    %v192 = vand.u32 %v191, 4294901760
    %193 = vmatpush1.msra.mxu0 %v192
    %194 = vmatprep.subr.mxu0 0.0
    %v195 = vand.u32 %v66, 4294901760
    %v196 = vsub.f32 %v66, %v195
    %v197 = vand.u32 %v196, 4294901760
    %v198 = vsub.f32 %v196, %v197
    %v199 = vand.u32 %v198, 4294901760
    %200 = vmatpush1.msra.mxu0 %v199
    %201 = vmatprep.subr.mxu0 0.0
    %v202 = vand.u32 %v65, 4294901760
    %v203 = vsub.f32 %v65, %v202
    %v204 = vand.u32 %v203, 4294901760
    %v205 = vsub.f32 %v203, %v204
    %v206 = vand.u32 %v205, 4294901760
    %207 = vmatpush1.msra.mxu0 %v206
    %208 = vmatprep.subr.mxu0 0.0
    %v209 = vand.u32 %v64, 4294901760
    %v210 = vsub.f32 %v64, %v209
    %v211 = vand.u32 %v210, 4294901760
    %v212 = vsub.f32 %v210, %v211
    %v213 = vand.u32 %v212, 4294901760
    %214 = vmatpush1.msra.mxu0 %v213
    %215 = vmatprep.subr.mxu0 0.0
    %v216 = vand.u32 %v63, 4294901760
    %v217 = vsub.f32 %v63, %v216
    %v218 = vand.u32 %v217, 4294901760
    %v219 = vsub.f32 %v217, %v218
    %v220 = vand.u32 %v219, 4294901760
    %221 = vmatpush1.msra.mxu0 %v220
    %222 = vmatprep.subr.mxu0 0.0
    %v223 = vand.u32 %v62, 4294901760
    %v224 = vsub.f32 %v62, %v223
    %v225 = vand.u32 %v224, 4294901760
    %v226 = vsub.f32 %v224, %v225
    %v227 = vand.u32 %v226, 4294901760
    %228 = vmatpush1.msra.mxu0 %v227
    %229 = vmatprep.subr.mxu0 0.0
    %230 = vmatpush2.msra.mxu0 0.0
    %231 = vmatprep.subr.mxu0 0.0
    %232 = vmatpush2.msra.mxu0 0.0
    %233 = vmatprep.subr.mxu0 0.0
    %234 = vmatpush2.msra.mxu0 0.0
    %235 = vmatprep.subr.mxu0 0.0
    %236 = vmatpush2.msra.mxu0 0.0
    %237 = vmatprep.subr.mxu0 0.0
    %238 = vmatpush2.msra.mxu0 0.0
    %239 = vmatprep.subr.mxu0 0.0
    %240 = vmatpush2.msra.mxu0 0.0
    %241 = vmatprep.subr.mxu0 0.0
    %242 = vmatpush2.msra.mxu0 0.0
    %243 = vmatprep.subr.mxu0 0.0
    %244 = vmatpush2.msra.mxu0 0.0
    %245 = vmatprep.subr.mxu0 0.0
    %246 = vmatpush2.msra.mxu0 0.0
    %247 = vmatprep.subr.mxu0 0.0
    %248 = vmatpush2.msra.mxu0 0.0
    %249 = vmatprep.subr.mxu0 0.0
    %250 = vmatpush2.msra.mxu0 0.0
    %251 = vmatprep.subr.mxu0 0.0
    %252 = vmatpush2.msra.mxu0 0.0
    %253 = vmatprep.subr.mxu0 0.0
    %254 = vmatpush2.msra.mxu0 0.0
    %255 = vmatprep.subr.mxu0 0.0
    %256 = vmatpush2.msra.mxu0 0.0
    %257 = vmatprep.subr.mxu0 0.0
    %258 = vmatpush2.msra.mxu0 0.0
    %259 = vmatprep.subr.mxu0 0.0
    %260 = vmatpush2.msra.mxu0 0.0
    %261 = vmatprep.mubr.f32.mxu0 0.0
    %v262 = vand.u32 %v72, 4294901760
    %263 = vmatmul.mubr.f32.gmra.mxu0 %v262
    %v264 = vpop.f32.mrf.mxu0
    %v265 = vadd.f32 %v154, %v264
    %v266 = vpop.f32.mrf.mxu0
    %267 = vdwg.mxu0
    %268 = vmatprep.subr.mxu0 0.0
    %269 = vmatpush1.msra.mxu0 0.0
    %270 = vmatprep.subr.mxu0 0.0
    %271 = vmatpush1.msra.mxu0 0.0
    %272 = vmatprep.subr.mxu0 0.0
    %273 = vmatpush1.msra.mxu0 0.0
    %274 = vmatprep.subr.mxu0 0.0
    %275 = vmatpush1.msra.mxu0 0.0
    %276 = vmatprep.subr.mxu0 0.0
    %277 = vmatpush1.msra.mxu0 0.0
    %278 = vmatprep.subr.mxu0 0.0
    %279 = vmatpush1.msra.mxu0 0.0
    %280 = vmatprep.subr.mxu0 0.0
    %281 = vmatpush1.msra.mxu0 0.0
    %282 = vmatprep.subr.mxu0 0.0
    %283 = vmatpush1.msra.mxu0 0.0
    %284 = vmatprep.subr.mxu0 0.0
    %v285 = vand.u32 %v69, 4294901760
    %v286 = vsub.f32 %v69, %v285
    %287 = vmatpush1.msra.mxu0 %v286
    %288 = vmatprep.subr.mxu0 0.0
    %v289 = vand.u32 %v68, 4294901760
    %v290 = vsub.f32 %v68, %v289
    %291 = vmatpush1.msra.mxu0 %v290
    %292 = vmatprep.subr.mxu0 0.0
    %v293 = vand.u32 %v67, 4294901760
    %v294 = vsub.f32 %v67, %v293
    %295 = vmatpush1.msra.mxu0 %v294
    %296 = vmatprep.subr.mxu0 0.0
    %v297 = vand.u32 %v66, 4294901760
    %v298 = vsub.f32 %v66, %v297
    %299 = vmatpush1.msra.mxu0 %v298
    %300 = vmatprep.subr.mxu0 0.0
    %v301 = vand.u32 %v65, 4294901760
    %v302 = vsub.f32 %v65, %v301
    %303 = vmatpush1.msra.mxu0 %v302
    %304 = vmatprep.subr.mxu0 0.0
    %v305 = vand.u32 %v64, 4294901760
    %v306 = vsub.f32 %v64, %v305
    %307 = vmatpush1.msra.mxu0 %v306
    %308 = vmatprep.subr.mxu0 0.0
    %v309 = vand.u32 %v63, 4294901760
    %v310 = vsub.f32 %v63, %v309
    %311 = vmatpush1.msra.mxu0 %v310
    %312 = vmatprep.subr.mxu0 0.0
    %v313 = vand.u32 %v62, 4294901760
    %v314 = vsub.f32 %v62, %v313
    %315 = vmatpush1.msra.mxu0 %v314
    %316 = vmatprep.subr.mxu0 0.0
    %317 = vmatpush2.msra.mxu0 0.0
    %318 = vmatprep.subr.mxu0 0.0
    %319 = vmatpush2.msra.mxu0 0.0
    %320 = vmatprep.subr.mxu0 0.0
    %321 = vmatpush2.msra.mxu0 0.0
    %322 = vmatprep.subr.mxu0 0.0
    %323 = vmatpush2.msra.mxu0 0.0
    %324 = vmatprep.subr.mxu0 0.0
    %325 = vmatpush2.msra.mxu0 0.0
    %326 = vmatprep.subr.mxu0 0.0
    %327 = vmatpush2.msra.mxu0 0.0
    %328 = vmatprep.subr.mxu0 0.0
    %329 = vmatpush2.msra.mxu0 0.0
    %330 = vmatprep.subr.mxu0 0.0
    %331 = vmatpush2.msra.mxu0 0.0
    %332 = vmatprep.subr.mxu0 0.0
    %333 = vmatpush2.msra.mxu0 0.0
    %334 = vmatprep.subr.mxu0 0.0
    %335 = vmatpush2.msra.mxu0 0.0
    %336 = vmatprep.subr.mxu0 0.0
    %337 = vmatpush2.msra.mxu0 0.0
    %338 = vmatprep.subr.mxu0 0.0
    %339 = vmatpush2.msra.mxu0 0.0
    %340 = vmatprep.subr.mxu0 0.0
    %341 = vmatpush2.msra.mxu0 0.0
    %342 = vmatprep.subr.mxu0 0.0
    %343 = vmatpush2.msra.mxu0 0.0
    %344 = vmatprep.subr.mxu0 0.0
    %345 = vmatpush2.msra.mxu0 0.0
    %346 = vmatprep.subr.mxu0 0.0
    %347 = vmatpush2.msra.mxu0 0.0
    %348 = vmatprep.mubr.f32.mxu0 0.0
    %v349 = vand.u32 %v72, 4294901760
    %v350 = vsub.f32 %v72, %v349
    %351 = vmatmul.mubr.f32.gmra.mxu0 %v350
    %v352 = vpop.f32.mrf.mxu0
    %v353 = vadd.f32 %v265, %v352
    %v354 = vpop.f32.mrf.mxu0
    %355 = vdwg.mxu0
    %356 = vmatprep.subr.mxu0 0.0
    %357 = vmatpush1.msra.mxu0 0.0
    %358 = vmatprep.subr.mxu0 0.0
    %359 = vmatpush1.msra.mxu0 0.0
    %360 = vmatprep.subr.mxu0 0.0
    %361 = vmatpush1.msra.mxu0 0.0
    %362 = vmatprep.subr.mxu0 0.0
    %363 = vmatpush1.msra.mxu0 0.0
    %364 = vmatprep.subr.mxu0 0.0
    %365 = vmatpush1.msra.mxu0 0.0
    %366 = vmatprep.subr.mxu0 0.0
    %367 = vmatpush1.msra.mxu0 0.0
    %368 = vmatprep.subr.mxu0 0.0
    %369 = vmatpush1.msra.mxu0 0.0
    %370 = vmatprep.subr.mxu0 0.0
    %371 = vmatpush1.msra.mxu0 0.0
    %372 = vmatprep.subr.mxu0 0.0
    %v373 = vand.u32 %v69, 4294901760
    %374 = vmatpush1.msra.mxu0 %v373
    %375 = vmatprep.subr.mxu0 0.0
    %v376 = vand.u32 %v68, 4294901760
    %377 = vmatpush1.msra.mxu0 %v376
    %378 = vmatprep.subr.mxu0 0.0
    %v379 = vand.u32 %v67, 4294901760
    %380 = vmatpush1.msra.mxu0 %v379
    %381 = vmatprep.subr.mxu0 0.0
    %v382 = vand.u32 %v66, 4294901760
    %383 = vmatpush1.msra.mxu0 %v382
    %384 = vmatprep.subr.mxu0 0.0
    %v385 = vand.u32 %v65, 4294901760
    %386 = vmatpush1.msra.mxu0 %v385
    %387 = vmatprep.subr.mxu0 0.0
    %v388 = vand.u32 %v64, 4294901760
    %389 = vmatpush1.msra.mxu0 %v388
    %390 = vmatprep.subr.mxu0 0.0
    %v391 = vand.u32 %v63, 4294901760
    %392 = vmatpush1.msra.mxu0 %v391
    %393 = vmatprep.subr.mxu0 0.0
    %v394 = vand.u32 %v62, 4294901760
    %395 = vmatpush1.msra.mxu0 %v394
    %396 = vmatprep.subr.mxu0 0.0
    %397 = vmatpush2.msra.mxu0 0.0
    %398 = vmatprep.subr.mxu0 0.0
    %399 = vmatpush2.msra.mxu0 0.0
    %400 = vmatprep.subr.mxu0 0.0
    %401 = vmatpush2.msra.mxu0 0.0
    %402 = vmatprep.subr.mxu0 0.0
    %403 = vmatpush2.msra.mxu0 0.0
    %404 = vmatprep.subr.mxu0 0.0
    %405 = vmatpush2.msra.mxu0 0.0
    %406 = vmatprep.subr.mxu0 0.0
    %407 = vmatpush2.msra.mxu0 0.0
    %408 = vmatprep.subr.mxu0 0.0
    %409 = vmatpush2.msra.mxu0 0.0
    %410 = vmatprep.subr.mxu0 0.0
    %411 = vmatpush2.msra.mxu0 0.0
    %412 = vmatprep.subr.mxu0 0.0
    %413 = vmatpush2.msra.mxu0 0.0
    %414 = vmatprep.subr.mxu0 0.0
    %415 = vmatpush2.msra.mxu0 0.0
    %416 = vmatprep.subr.mxu0 0.0
    %417 = vmatpush2.msra.mxu0 0.0
    %418 = vmatprep.subr.mxu0 0.0
    %419 = vmatpush2.msra.mxu0 0.0
    %420 = vmatprep.subr.mxu0 0.0
    %421 = vmatpush2.msra.mxu0 0.0
    %422 = vmatprep.subr.mxu0 0.0
    %423 = vmatpush2.msra.mxu0 0.0
    %424 = vmatprep.subr.mxu0 0.0
    %425 = vmatpush2.msra.mxu0 0.0
    %426 = vmatprep.subr.mxu0 0.0
    %427 = vmatpush2.msra.mxu0 0.0
    %428 = vmatprep.mubr.f32.mxu0 0.0
    %v429 = vand.u32 %v72, 4294901760
    %v430 = vsub.f32 %v72, %v429
    %v431 = vand.u32 %v430, 4294901760
    %432 = vmatmul.mubr.f32.gmra.mxu0 %v431
    %v433 = vpop.f32.mrf.mxu0
    %v434 = vadd.f32 %v353, %v433
    %v435 = vpop.f32.mrf.mxu0
    %436 = vdwg.mxu0
    %437 = vmatprep.subr.mxu0 0.0
    %438 = vmatpush1.msra.mxu0 0.0
    %439 = vmatprep.subr.mxu0 0.0
    %440 = vmatpush1.msra.mxu0 0.0
    %441 = vmatprep.subr.mxu0 0.0
    %442 = vmatpush1.msra.mxu0 0.0
    %443 = vmatprep.subr.mxu0 0.0
    %444 = vmatpush1.msra.mxu0 0.0
    %445 = vmatprep.subr.mxu0 0.0
    %446 = vmatpush1.msra.mxu0 0.0
    %447 = vmatprep.subr.mxu0 0.0
    %448 = vmatpush1.msra.mxu0 0.0
    %449 = vmatprep.subr.mxu0 0.0
    %450 = vmatpush1.msra.mxu0 0.0
    %451 = vmatprep.subr.mxu0 0.0
    %452 = vmatpush1.msra.mxu0 0.0
    %453 = vmatprep.subr.mxu0 0.0
    %v454 = vand.u32 %v69, 4294901760
    %v455 = vsub.f32 %v69, %v454
    %v456 = vand.u32 %v455, 4294901760
    %457 = vmatpush1.msra.mxu0 %v456
    %458 = vmatprep.subr.mxu0 0.0
    %v459 = vand.u32 %v68, 4294901760
    %v460 = vsub.f32 %v68, %v459
    %v461 = vand.u32 %v460, 4294901760
    %462 = vmatpush1.msra.mxu0 %v461
    %463 = vmatprep.subr.mxu0 0.0
    %v464 = vand.u32 %v67, 4294901760
    %v465 = vsub.f32 %v67, %v464
    %v466 = vand.u32 %v465, 4294901760
    %467 = vmatpush1.msra.mxu0 %v466
    %468 = vmatprep.subr.mxu0 0.0
    %v469 = vand.u32 %v66, 4294901760
    %v470 = vsub.f32 %v66, %v469
    %v471 = vand.u32 %v470, 4294901760
    %472 = vmatpush1.msra.mxu0 %v471
    %473 = vmatprep.subr.mxu0 0.0
    %v474 = vand.u32 %v65, 4294901760
    %v475 = vsub.f32 %v65, %v474
    %v476 = vand.u32 %v475, 4294901760
    %477 = vmatpush1.msra.mxu0 %v476
    %478 = vmatprep.subr.mxu0 0.0
    %v479 = vand.u32 %v64, 4294901760
    %v480 = vsub.f32 %v64, %v479
    %v481 = vand.u32 %v480, 4294901760
    %482 = vmatpush1.msra.mxu0 %v481
    %483 = vmatprep.subr.mxu0 0.0
    %v484 = vand.u32 %v63, 4294901760
    %v485 = vsub.f32 %v63, %v484
    %v486 = vand.u32 %v485, 4294901760
    %487 = vmatpush1.msra.mxu0 %v486
    %488 = vmatprep.subr.mxu0 0.0
    %v489 = vand.u32 %v62, 4294901760
    %v490 = vsub.f32 %v62, %v489
    %v491 = vand.u32 %v490, 4294901760
    %492 = vmatpush1.msra.mxu0 %v491
    %493 = vmatprep.subr.mxu0 0.0
    %494 = vmatpush2.msra.mxu0 0.0
    %495 = vmatprep.subr.mxu0 0.0
    %496 = vmatpush2.msra.mxu0 0.0
    %497 = vmatprep.subr.mxu0 0.0
    %498 = vmatpush2.msra.mxu0 0.0
    %499 = vmatprep.subr.mxu0 0.0
    %500 = vmatpush2.msra.mxu0 0.0
    %501 = vmatprep.subr.mxu0 0.0
    %502 = vmatpush2.msra.mxu0 0.0
    %503 = vmatprep.subr.mxu0 0.0
    %504 = vmatpush2.msra.mxu0 0.0
    %505 = vmatprep.subr.mxu0 0.0
    %506 = vmatpush2.msra.mxu0 0.0
    %507 = vmatprep.subr.mxu0 0.0
    %508 = vmatpush2.msra.mxu0 0.0
    %509 = vmatprep.subr.mxu0 0.0
    %510 = vmatpush2.msra.mxu0 0.0
    %511 = vmatprep.subr.mxu0 0.0
    %512 = vmatpush2.msra.mxu0 0.0
    %513 = vmatprep.subr.mxu0 0.0
    %514 = vmatpush2.msra.mxu0 0.0
    %515 = vmatprep.subr.mxu0 0.0
    %516 = vmatpush2.msra.mxu0 0.0
    %517 = vmatprep.subr.mxu0 0.0
    %518 = vmatpush2.msra.mxu0 0.0
    %519 = vmatprep.subr.mxu0 0.0
    %520 = vmatpush2.msra.mxu0 0.0
    %521 = vmatprep.subr.mxu0 0.0
    %522 = vmatpush2.msra.mxu0 0.0
    %523 = vmatprep.subr.mxu0 0.0
    %524 = vmatpush2.msra.mxu0 0.0
    %525 = vmatprep.mubr.f32.mxu0 0.0
    %v526 = vand.u32 %v72, 4294901760
    %527 = vmatmul.mubr.f32.gmra.mxu0 %v526
    %v528 = vpop.f32.mrf.mxu0
    %v529 = vadd.f32 %v434, %v528
    %v530 = vpop.f32.mrf.mxu0
    %531 = vdwg.mxu0
    %532 = vmatprep.subr.mxu0 0.0
    %533 = vmatpush1.msra.mxu0 0.0
    %534 = vmatprep.subr.mxu0 0.0
    %535 = vmatpush1.msra.mxu0 0.0
    %536 = vmatprep.subr.mxu0 0.0
    %537 = vmatpush1.msra.mxu0 0.0
    %538 = vmatprep.subr.mxu0 0.0
    %539 = vmatpush1.msra.mxu0 0.0
    %540 = vmatprep.subr.mxu0 0.0
    %541 = vmatpush1.msra.mxu0 0.0
    %542 = vmatprep.subr.mxu0 0.0
    %543 = vmatpush1.msra.mxu0 0.0
    %544 = vmatprep.subr.mxu0 0.0
    %545 = vmatpush1.msra.mxu0 0.0
    %546 = vmatprep.subr.mxu0 0.0
    %547 = vmatpush1.msra.mxu0 0.0
    %548 = vmatprep.subr.mxu0 0.0
    %v549 = vand.u32 %v69, 4294901760
    %550 = vmatpush1.msra.mxu0 %v549
    %551 = vmatprep.subr.mxu0 0.0
    %v552 = vand.u32 %v68, 4294901760
    %553 = vmatpush1.msra.mxu0 %v552
    %554 = vmatprep.subr.mxu0 0.0
    %v555 = vand.u32 %v67, 4294901760
    %556 = vmatpush1.msra.mxu0 %v555
    %557 = vmatprep.subr.mxu0 0.0
    %v558 = vand.u32 %v66, 4294901760
    %559 = vmatpush1.msra.mxu0 %v558
    %560 = vmatprep.subr.mxu0 0.0
    %v561 = vand.u32 %v65, 4294901760
    %562 = vmatpush1.msra.mxu0 %v561
    %563 = vmatprep.subr.mxu0 0.0
    %v564 = vand.u32 %v64, 4294901760
    %565 = vmatpush1.msra.mxu0 %v564
    %566 = vmatprep.subr.mxu0 0.0
    %v567 = vand.u32 %v63, 4294901760
    %568 = vmatpush1.msra.mxu0 %v567
    %569 = vmatprep.subr.mxu0 0.0
    %v570 = vand.u32 %v62, 4294901760
    %571 = vmatpush1.msra.mxu0 %v570
    %572 = vmatprep.subr.mxu0 0.0
    %573 = vmatpush2.msra.mxu0 0.0
    %574 = vmatprep.subr.mxu0 0.0
    %575 = vmatpush2.msra.mxu0 0.0
    %576 = vmatprep.subr.mxu0 0.0
    %577 = vmatpush2.msra.mxu0 0.0
    %578 = vmatprep.subr.mxu0 0.0
    %579 = vmatpush2.msra.mxu0 0.0
    %580 = vmatprep.subr.mxu0 0.0
    %581 = vmatpush2.msra.mxu0 0.0
    %582 = vmatprep.subr.mxu0 0.0
    %583 = vmatpush2.msra.mxu0 0.0
    %584 = vmatprep.subr.mxu0 0.0
    %585 = vmatpush2.msra.mxu0 0.0
    %586 = vmatprep.subr.mxu0 0.0
    %587 = vmatpush2.msra.mxu0 0.0
    %588 = vmatprep.subr.mxu0 0.0
    %589 = vmatpush2.msra.mxu0 0.0
    %590 = vmatprep.subr.mxu0 0.0
    %591 = vmatpush2.msra.mxu0 0.0
    %592 = vmatprep.subr.mxu0 0.0
    %593 = vmatpush2.msra.mxu0 0.0
    %594 = vmatprep.subr.mxu0 0.0
    %595 = vmatpush2.msra.mxu0 0.0
    %596 = vmatprep.subr.mxu0 0.0
    %597 = vmatpush2.msra.mxu0 0.0
    %598 = vmatprep.subr.mxu0 0.0
    %599 = vmatpush2.msra.mxu0 0.0
    %600 = vmatprep.subr.mxu0 0.0
    %601 = vmatpush2.msra.mxu0 0.0
    %602 = vmatprep.subr.mxu0 0.0
    %603 = vmatpush2.msra.mxu0 0.0
    %604 = vmatprep.mubr.f32.mxu0 0.0
    %v605 = vand.u32 %v72, 4294901760
    %606 = vmatmul.mubr.f32.gmra.mxu0 %v605
    %v607 = vpop.f32.mrf.mxu0
    %v608 = vadd.f32 %v529, %v607
    %v609 = vpop.f32.mrf.mxu0
    %610 = vdwg.mxu0
    %v611 = vld [vmem:[#allocation5] sm:$0xff]
    %v612 = vld [vmem:[#allocation5 + $0x8] sm:$0xff]
    %v613 = vld [vmem:[#allocation5 + $0x10] sm:$0xff]
    %v614 = vld [vmem:[#allocation5 + $0x18] sm:$0xff]
    %v615 = vld [vmem:[#allocation5 + $0x20] sm:$0xff]
    %v616 = vld [vmem:[#allocation5 + $0x28] sm:$0xff]
    %v617 = vld [vmem:[#allocation5 + $0x30] sm:$0xff]
    %v618 = vld [vmem:[#allocation5 + $0x38] sm:$0xff]
    %v619 = vld [vmem:[#allocation5 + $0x40] sm:$0xff]
    %v620 = vld [vmem:[#allocation5 + $0x48] sm:$0xff]
    %v621 = vld [vmem:[#allocation5 + $0x50] sm:$0xff]
    %v622 = vld [vmem:[#allocation5 + $0x58] sm:$0xff]
    %vm623 = vcmask 785408
    %v625 = vsel %vm623, %v61, 0
    %627 = vmatprep.subr.mxu0 0.0
    %628 = vmatpush1.msra.mxu0 0.0
    %629 = vmatprep.subr.mxu0 0.0
    %630 = vmatpush1.msra.mxu0 0.0
    %631 = vmatprep.subr.mxu0 0.0
    %632 = vmatpush1.msra.mxu0 0.0
    %633 = vmatprep.subr.mxu0 0.0
    %634 = vmatpush1.msra.mxu0 0.0
    %635 = vmatprep.subr.mxu0 0.0
    %v636 = vand.u32 %v622, 4294901760
    %637 = vmatpush1.msra.mxu0 %v636
    %638 = vmatprep.subr.mxu0 0.0
    %v639 = vand.u32 %v621, 4294901760
    %640 = vmatpush1.msra.mxu0 %v639
    %641 = vmatprep.subr.mxu0 0.0
    %v642 = vand.u32 %v620, 4294901760
    %643 = vmatpush1.msra.mxu0 %v642
    %644 = vmatprep.subr.mxu0 0.0
    %v645 = vand.u32 %v619, 4294901760
    %646 = vmatpush1.msra.mxu0 %v645
    %647 = vmatprep.subr.mxu0 0.0
    %v648 = vand.u32 %v618, 4294901760
    %649 = vmatpush1.msra.mxu0 %v648
    %650 = vmatprep.subr.mxu0 0.0
    %v651 = vand.u32 %v617, 4294901760
    %652 = vmatpush1.msra.mxu0 %v651
    %653 = vmatprep.subr.mxu0 0.0
    %v654 = vand.u32 %v616, 4294901760
    %655 = vmatpush1.msra.mxu0 %v654
    %656 = vmatprep.subr.mxu0 0.0
    %v657 = vand.u32 %v615, 4294901760
    %658 = vmatpush1.msra.mxu0 %v657
    %659 = vmatprep.subr.mxu0 0.0
    %v660 = vand.u32 %v614, 4294901760
    %661 = vmatpush1.msra.mxu0 %v660
    %662 = vmatprep.subr.mxu0 0.0
    %v663 = vand.u32 %v613, 4294901760
    %664 = vmatpush1.msra.mxu0 %v663
    %665 = vmatprep.subr.mxu0 0.0
    %v666 = vand.u32 %v612, 4294901760
    %667 = vmatpush1.msra.mxu0 %v666
    %668 = vmatprep.subr.mxu0 0.0
    %v669 = vand.u32 %v611, 4294901760
    %670 = vmatpush1.msra.mxu0 %v669
    %671 = vmatprep.subr.mxu0 0.0
    %672 = vmatpush2.msra.mxu0 0.0
    %673 = vmatprep.subr.mxu0 0.0
    %674 = vmatpush2.msra.mxu0 0.0
    %675 = vmatprep.subr.mxu0 0.0
    %676 = vmatpush2.msra.mxu0 0.0
    %677 = vmatprep.subr.mxu0 0.0
    %678 = vmatpush2.msra.mxu0 0.0
    %679 = vmatprep.subr.mxu0 0.0
    %680 = vmatpush2.msra.mxu0 0.0
    %681 = vmatprep.subr.mxu0 0.0
    %682 = vmatpush2.msra.mxu0 0.0
    %683 = vmatprep.subr.mxu0 0.0
    %684 = vmatpush2.msra.mxu0 0.0
    %685 = vmatprep.subr.mxu0 0.0
    %686 = vmatpush2.msra.mxu0 0.0
    %687 = vmatprep.subr.mxu0 0.0
    %688 = vmatpush2.msra.mxu0 0.0
    %689 = vmatprep.subr.mxu0 0.0
    %690 = vmatpush2.msra.mxu0 0.0
    %691 = vmatprep.subr.mxu0 0.0
    %692 = vmatpush2.msra.mxu0 0.0
    %693 = vmatprep.subr.mxu0 0.0
    %694 = vmatpush2.msra.mxu0 0.0
    %695 = vmatprep.subr.mxu0 0.0
    %696 = vmatpush2.msra.mxu0 0.0
    %697 = vmatprep.subr.mxu0 0.0
    %698 = vmatpush2.msra.mxu0 0.0
    %699 = vmatprep.subr.mxu0 0.0
    %700 = vmatpush2.msra.mxu0 0.0
    %701 = vmatprep.subr.mxu0 0.0
    %702 = vmatpush2.msra.mxu0 0.0
    %703 = vmatprep.mubr.f32.mxu0 0.0
    %v704 = vand.u32 %v625, 4294901760
    %v705 = vsub.f32 %v625, %v704
    %v706 = vand.u32 %v705, 4294901760
    %v707 = vsub.f32 %v705, %v706
    %v708 = vand.u32 %v707, 4294901760
    %709 = vmatmul.mubr.f32.gmra.mxu0 %v708
    %v710 = vpop.f32.mrf.mxu0
    %v711 = vadd.f32 0.0, %v710
    %v712 = vpop.f32.mrf.mxu0
    %713 = vdwg.mxu0
    %714 = vmatprep.subr.mxu0 0.0
    %715 = vmatpush1.msra.mxu0 0.0
    %716 = vmatprep.subr.mxu0 0.0
    %717 = vmatpush1.msra.mxu0 0.0
    %718 = vmatprep.subr.mxu0 0.0
    %719 = vmatpush1.msra.mxu0 0.0
    %720 = vmatprep.subr.mxu0 0.0
    %721 = vmatpush1.msra.mxu0 0.0
    %722 = vmatprep.subr.mxu0 0.0
    %v723 = vand.u32 %v622, 4294901760
    %v724 = vsub.f32 %v622, %v723
    %v725 = vand.u32 %v724, 4294901760
    %v726 = vsub.f32 %v724, %v725
    %v727 = vand.u32 %v726, 4294901760
    %728 = vmatpush1.msra.mxu0 %v727
    %729 = vmatprep.subr.mxu0 0.0
    %v730 = vand.u32 %v621, 4294901760
    %v731 = vsub.f32 %v621, %v730
    %v732 = vand.u32 %v731, 4294901760
    %v733 = vsub.f32 %v731, %v732
    %v734 = vand.u32 %v733, 4294901760
    %735 = vmatpush1.msra.mxu0 %v734
    %736 = vmatprep.subr.mxu0 0.0
    %v737 = vand.u32 %v620, 4294901760
    %v738 = vsub.f32 %v620, %v737
    %v739 = vand.u32 %v738, 4294901760
    %v740 = vsub.f32 %v738, %v739
    %v741 = vand.u32 %v740, 4294901760
    %742 = vmatpush1.msra.mxu0 %v741
    %743 = vmatprep.subr.mxu0 0.0
    %v744 = vand.u32 %v619, 4294901760
    %v745 = vsub.f32 %v619, %v744
    %v746 = vand.u32 %v745, 4294901760
    %v747 = vsub.f32 %v745, %v746
    %v748 = vand.u32 %v747, 4294901760
    %749 = vmatpush1.msra.mxu0 %v748
    %750 = vmatprep.subr.mxu0 0.0
    %v751 = vand.u32 %v618, 4294901760
    %v752 = vsub.f32 %v618, %v751
    %v753 = vand.u32 %v752, 4294901760
    %v754 = vsub.f32 %v752, %v753
    %v755 = vand.u32 %v754, 4294901760
    %756 = vmatpush1.msra.mxu0 %v755
    %757 = vmatprep.subr.mxu0 0.0
    %v758 = vand.u32 %v617, 4294901760
    %v759 = vsub.f32 %v617, %v758
    %v760 = vand.u32 %v759, 4294901760
    %v761 = vsub.f32 %v759, %v760
    %v762 = vand.u32 %v761, 4294901760
    %763 = vmatpush1.msra.mxu0 %v762
    %764 = vmatprep.subr.mxu0 0.0
    %v765 = vand.u32 %v616, 4294901760
    %v766 = vsub.f32 %v616, %v765
    %v767 = vand.u32 %v766, 4294901760
    %v768 = vsub.f32 %v766, %v767
    %v769 = vand.u32 %v768, 4294901760
    %770 = vmatpush1.msra.mxu0 %v769
    %771 = vmatprep.subr.mxu0 0.0
    %v772 = vand.u32 %v615, 4294901760
    %v773 = vsub.f32 %v615, %v772
    %v774 = vand.u32 %v773, 4294901760
    %v775 = vsub.f32 %v773, %v774
    %v776 = vand.u32 %v775, 4294901760
    %777 = vmatpush1.msra.mxu0 %v776
    %778 = vmatprep.subr.mxu0 0.0
    %v779 = vand.u32 %v614, 4294901760
    %v780 = vsub.f32 %v614, %v779
    %v781 = vand.u32 %v780, 4294901760
    %v782 = vsub.f32 %v780, %v781
    %v783 = vand.u32 %v782, 4294901760
    %784 = vmatpush1.msra.mxu0 %v783
    %785 = vmatprep.subr.mxu0 0.0
    %v786 = vand.u32 %v613, 4294901760
    %v787 = vsub.f32 %v613, %v786
    %v788 = vand.u32 %v787, 4294901760
    %v789 = vsub.f32 %v787, %v788
    %v790 = vand.u32 %v789, 4294901760
    %791 = vmatpush1.msra.mxu0 %v790
    %792 = vmatprep.subr.mxu0 0.0
    %v793 = vand.u32 %v612, 4294901760
    %v794 = vsub.f32 %v612, %v793
    %v795 = vand.u32 %v794, 4294901760
    %v796 = vsub.f32 %v794, %v795
    %v797 = vand.u32 %v796, 4294901760
    %798 = vmatpush1.msra.mxu0 %v797
    %799 = vmatprep.subr.mxu0 0.0
    %v800 = vand.u32 %v611, 4294901760
    %v801 = vsub.f32 %v611, %v800
    %v802 = vand.u32 %v801, 4294901760
    %v803 = vsub.f32 %v801, %v802
    %v804 = vand.u32 %v803, 4294901760
    %805 = vmatpush1.msra.mxu0 %v804
    %806 = vmatprep.subr.mxu0 0.0
    %807 = vmatpush2.msra.mxu0 0.0
    %808 = vmatprep.subr.mxu0 0.0
    %809 = vmatpush2.msra.mxu0 0.0
    %810 = vmatprep.subr.mxu0 0.0
    %811 = vmatpush2.msra.mxu0 0.0
    %812 = vmatprep.subr.mxu0 0.0
    %813 = vmatpush2.msra.mxu0 0.0
    %814 = vmatprep.subr.mxu0 0.0
    %815 = vmatpush2.msra.mxu0 0.0
    %816 = vmatprep.subr.mxu0 0.0
    %817 = vmatpush2.msra.mxu0 0.0
    %818 = vmatprep.subr.mxu0 0.0
    %819 = vmatpush2.msra.mxu0 0.0
    %820 = vmatprep.subr.mxu0 0.0
    %821 = vmatpush2.msra.mxu0 0.0
    %822 = vmatprep.subr.mxu0 0.0
    %823 = vmatpush2.msra.mxu0 0.0
    %824 = vmatprep.subr.mxu0 0.0
    %825 = vmatpush2.msra.mxu0 0.0
    %826 = vmatprep.subr.mxu0 0.0
    %827 = vmatpush2.msra.mxu0 0.0
    %828 = vmatprep.subr.mxu0 0.0
    %829 = vmatpush2.msra.mxu0 0.0
    %830 = vmatprep.subr.mxu0 0.0
    %831 = vmatpush2.msra.mxu0 0.0
    %832 = vmatprep.subr.mxu0 0.0
    %833 = vmatpush2.msra.mxu0 0.0
    %834 = vmatprep.subr.mxu0 0.0
    %835 = vmatpush2.msra.mxu0 0.0
    %836 = vmatprep.subr.mxu0 0.0
    %837 = vmatpush2.msra.mxu0 0.0
    %838 = vmatprep.mubr.f32.mxu0 0.0
    %v839 = vand.u32 %v625, 4294901760
    %840 = vmatmul.mubr.f32.gmra.mxu0 %v839
    %v841 = vpop.f32.mrf.mxu0
    %v842 = vadd.f32 %v711, %v841
    %v843 = vpop.f32.mrf.mxu0
    %844 = vdwg.mxu0
    %845 = vmatprep.subr.mxu0 0.0
    %846 = vmatpush1.msra.mxu0 0.0
    %847 = vmatprep.subr.mxu0 0.0
    %848 = vmatpush1.msra.mxu0 0.0
    %849 = vmatprep.subr.mxu0 0.0
    %850 = vmatpush1.msra.mxu0 0.0
    %851 = vmatprep.subr.mxu0 0.0
    %852 = vmatpush1.msra.mxu0 0.0
    %853 = vmatprep.subr.mxu0 0.0
    %v854 = vand.u32 %v622, 4294901760
    %v855 = vsub.f32 %v622, %v854
    %856 = vmatpush1.msra.mxu0 %v855
    %857 = vmatprep.subr.mxu0 0.0
    %v858 = vand.u32 %v621, 4294901760
    %v859 = vsub.f32 %v621, %v858
    %860 = vmatpush1.msra.mxu0 %v859
    %861 = vmatprep.subr.mxu0 0.0
    %v862 = vand.u32 %v620, 4294901760
    %v863 = vsub.f32 %v620, %v862
    %864 = vmatpush1.msra.mxu0 %v863
    %865 = vmatprep.subr.mxu0 0.0
    %v866 = vand.u32 %v619, 4294901760
    %v867 = vsub.f32 %v619, %v866
    %868 = vmatpush1.msra.mxu0 %v867
    %869 = vmatprep.subr.mxu0 0.0
    %v870 = vand.u32 %v618, 4294901760
    %v871 = vsub.f32 %v618, %v870
    %872 = vmatpush1.msra.mxu0 %v871
    %873 = vmatprep.subr.mxu0 0.0
    %v874 = vand.u32 %v617, 4294901760
    %v875 = vsub.f32 %v617, %v874
    %876 = vmatpush1.msra.mxu0 %v875
    %877 = vmatprep.subr.mxu0 0.0
    %v878 = vand.u32 %v616, 4294901760
    %v879 = vsub.f32 %v616, %v878
    %880 = vmatpush1.msra.mxu0 %v879
    %881 = vmatprep.subr.mxu0 0.0
    %v882 = vand.u32 %v615, 4294901760
    %v883 = vsub.f32 %v615, %v882
    %884 = vmatpush1.msra.mxu0 %v883
    %885 = vmatprep.subr.mxu0 0.0
    %v886 = vand.u32 %v614, 4294901760
    %v887 = vsub.f32 %v614, %v886
    %888 = vmatpush1.msra.mxu0 %v887
    %889 = vmatprep.subr.mxu0 0.0
    %v890 = vand.u32 %v613, 4294901760
    %v891 = vsub.f32 %v613, %v890
    %892 = vmatpush1.msra.mxu0 %v891
    %893 = vmatprep.subr.mxu0 0.0
    %v894 = vand.u32 %v612, 4294901760
    %v895 = vsub.f32 %v612, %v894
    %896 = vmatpush1.msra.mxu0 %v895
    %897 = vmatprep.subr.mxu0 0.0
    %v898 = vand.u32 %v611, 4294901760
    %v899 = vsub.f32 %v611, %v898
    %900 = vmatpush1.msra.mxu0 %v899
    %901 = vmatprep.subr.mxu0 0.0
    %902 = vmatpush2.msra.mxu0 0.0
    %903 = vmatprep.subr.mxu0 0.0
    %904 = vmatpush2.msra.mxu0 0.0
    %905 = vmatprep.subr.mxu0 0.0
    %906 = vmatpush2.msra.mxu0 0.0
    %907 = vmatprep.subr.mxu0 0.0
    %908 = vmatpush2.msra.mxu0 0.0
    %909 = vmatprep.subr.mxu0 0.0
    %910 = vmatpush2.msra.mxu0 0.0
    %911 = vmatprep.subr.mxu0 0.0
    %912 = vmatpush2.msra.mxu0 0.0
    %913 = vmatprep.subr.mxu0 0.0
    %914 = vmatpush2.msra.mxu0 0.0
    %915 = vmatprep.subr.mxu0 0.0
    %916 = vmatpush2.msra.mxu0 0.0
    %917 = vmatprep.subr.mxu0 0.0
    %918 = vmatpush2.msra.mxu0 0.0
    %919 = vmatprep.subr.mxu0 0.0
    %920 = vmatpush2.msra.mxu0 0.0
    %921 = vmatprep.subr.mxu0 0.0
    %922 = vmatpush2.msra.mxu0 0.0
    %923 = vmatprep.subr.mxu0 0.0
    %924 = vmatpush2.msra.mxu0 0.0
    %925 = vmatprep.subr.mxu0 0.0
    %926 = vmatpush2.msra.mxu0 0.0
    %927 = vmatprep.subr.mxu0 0.0
    %928 = vmatpush2.msra.mxu0 0.0
    %929 = vmatprep.subr.mxu0 0.0
    %930 = vmatpush2.msra.mxu0 0.0
    %931 = vmatprep.subr.mxu0 0.0
    %932 = vmatpush2.msra.mxu0 0.0
    %933 = vmatprep.mubr.f32.mxu0 0.0
    %v934 = vand.u32 %v625, 4294901760
    %v935 = vsub.f32 %v625, %v934
    %936 = vmatmul.mubr.f32.gmra.mxu0 %v935
    %v937 = vpop.f32.mrf.mxu0
    %v938 = vadd.f32 %v842, %v937
    %v939 = vpop.f32.mrf.mxu0
    %940 = vdwg.mxu0
    %941 = vmatprep.subr.mxu0 0.0
    %942 = vmatpush1.msra.mxu0 0.0
    %943 = vmatprep.subr.mxu0 0.0
    %944 = vmatpush1.msra.mxu0 0.0
    %945 = vmatprep.subr.mxu0 0.0
    %946 = vmatpush1.msra.mxu0 0.0
    %947 = vmatprep.subr.mxu0 0.0
    %948 = vmatpush1.msra.mxu0 0.0
    %949 = vmatprep.subr.mxu0 0.0
    %v950 = vand.u32 %v622, 4294901760
    %951 = vmatpush1.msra.mxu0 %v950
    %952 = vmatprep.subr.mxu0 0.0
    %v953 = vand.u32 %v621, 4294901760
    %954 = vmatpush1.msra.mxu0 %v953
    %955 = vmatprep.subr.mxu0 0.0
    %v956 = vand.u32 %v620, 4294901760
    %957 = vmatpush1.msra.mxu0 %v956
    %958 = vmatprep.subr.mxu0 0.0
    %v959 = vand.u32 %v619, 4294901760
    %960 = vmatpush1.msra.mxu0 %v959
    %961 = vmatprep.subr.mxu0 0.0
    %v962 = vand.u32 %v618, 4294901760
    %963 = vmatpush1.msra.mxu0 %v962
    %964 = vmatprep.subr.mxu0 0.0
    %v965 = vand.u32 %v617, 4294901760
    %966 = vmatpush1.msra.mxu0 %v965
    %967 = vmatprep.subr.mxu0 0.0
    %v968 = vand.u32 %v616, 4294901760
    %969 = vmatpush1.msra.mxu0 %v968
    %970 = vmatprep.subr.mxu0 0.0
    %v971 = vand.u32 %v615, 4294901760
    %972 = vmatpush1.msra.mxu0 %v971
    %973 = vmatprep.subr.mxu0 0.0
    %v974 = vand.u32 %v614, 4294901760
    %975 = vmatpush1.msra.mxu0 %v974
    %976 = vmatprep.subr.mxu0 0.0
    %v977 = vand.u32 %v613, 4294901760
    %978 = vmatpush1.msra.mxu0 %v977
    %979 = vmatprep.subr.mxu0 0.0
    %v980 = vand.u32 %v612, 4294901760
    %981 = vmatpush1.msra.mxu0 %v980
    %982 = vmatprep.subr.mxu0 0.0
    %v983 = vand.u32 %v611, 4294901760
    %984 = vmatpush1.msra.mxu0 %v983
    %985 = vmatprep.subr.mxu0 0.0
    %986 = vmatpush2.msra.mxu0 0.0
    %987 = vmatprep.subr.mxu0 0.0
    %988 = vmatpush2.msra.mxu0 0.0
    %989 = vmatprep.subr.mxu0 0.0
    %990 = vmatpush2.msra.mxu0 0.0
    %991 = vmatprep.subr.mxu0 0.0
    %992 = vmatpush2.msra.mxu0 0.0
    %993 = vmatprep.subr.mxu0 0.0
    %994 = vmatpush2.msra.mxu0 0.0
    %995 = vmatprep.subr.mxu0 0.0
    %996 = vmatpush2.msra.mxu0 0.0
    %997 = vmatprep.subr.mxu0 0.0
    %998 = vmatpush2.msra.mxu0 0.0
    %999 = vmatprep.subr.mxu0 0.0
    %1000 = vmatpush2.msra.mxu0 0.0
    %1001 = vmatprep.subr.mxu0 0.0
    %1002 = vmatpush2.msra.mxu0 0.0
    %1003 = vmatprep.subr.mxu0 0.0
    %1004 = vmatpush2.msra.mxu0 0.0
    %1005 = vmatprep.subr.mxu0 0.0
    %1006 = vmatpush2.msra.mxu0 0.0
    %1007 = vmatprep.subr.mxu0 0.0
    %1008 = vmatpush2.msra.mxu0 0.0
    %1009 = vmatprep.subr.mxu0 0.0
    %1010 = vmatpush2.msra.mxu0 0.0
    %1011 = vmatprep.subr.mxu0 0.0
    %1012 = vmatpush2.msra.mxu0 0.0
    %1013 = vmatprep.subr.mxu0 0.0
    %1014 = vmatpush2.msra.mxu0 0.0
    %1015 = vmatprep.subr.mxu0 0.0
    %1016 = vmatpush2.msra.mxu0 0.0
    %1017 = vmatprep.mubr.f32.mxu0 0.0
    %v1018 = vand.u32 %v625, 4294901760
    %v1019 = vsub.f32 %v625, %v1018
    %v1020 = vand.u32 %v1019, 4294901760
    %1021 = vmatmul.mubr.f32.gmra.mxu0 %v1020
    %v1022 = vpop.f32.mrf.mxu0
    %v1023 = vadd.f32 %v938, %v1022
    %v1024 = vpop.f32.mrf.mxu0
    %1025 = vdwg.mxu0
    %1026 = vmatprep.subr.mxu0 0.0
    %1027 = vmatpush1.msra.mxu0 0.0
    %1028 = vmatprep.subr.mxu0 0.0
    %1029 = vmatpush1.msra.mxu0 0.0
    %1030 = vmatprep.subr.mxu0 0.0
    %1031 = vmatpush1.msra.mxu0 0.0
    %1032 = vmatprep.subr.mxu0 0.0
    %1033 = vmatpush1.msra.mxu0 0.0
    %1034 = vmatprep.subr.mxu0 0.0
    %v1035 = vand.u32 %v622, 4294901760
    %v1036 = vsub.f32 %v622, %v1035
    %v1037 = vand.u32 %v1036, 4294901760
    %1038 = vmatpush1.msra.mxu0 %v1037
    %1039 = vmatprep.subr.mxu0 0.0
    %v1040 = vand.u32 %v621, 4294901760
    %v1041 = vsub.f32 %v621, %v1040
    %v1042 = vand.u32 %v1041, 4294901760
    %1043 = vmatpush1.msra.mxu0 %v1042
    %1044 = vmatprep.subr.mxu0 0.0
    %v1045 = vand.u32 %v620, 4294901760
    %v1046 = vsub.f32 %v620, %v1045
    %v1047 = vand.u32 %v1046, 4294901760
    %1048 = vmatpush1.msra.mxu0 %v1047
    %1049 = vmatprep.subr.mxu0 0.0
    %v1050 = vand.u32 %v619, 4294901760
    %v1051 = vsub.f32 %v619, %v1050
    %v1052 = vand.u32 %v1051, 4294901760
    %1053 = vmatpush1.msra.mxu0 %v1052
    %1054 = vmatprep.subr.mxu0 0.0
    %v1055 = vand.u32 %v618, 4294901760
    %v1056 = vsub.f32 %v618, %v1055
    %v1057 = vand.u32 %v1056, 4294901760
    %1058 = vmatpush1.msra.mxu0 %v1057
    %1059 = vmatprep.subr.mxu0 0.0
    %v1060 = vand.u32 %v617, 4294901760
    %v1061 = vsub.f32 %v617, %v1060
    %v1062 = vand.u32 %v1061, 4294901760
    %1063 = vmatpush1.msra.mxu0 %v1062
    %1064 = vmatprep.subr.mxu0 0.0
    %v1065 = vand.u32 %v616, 4294901760
    %v1066 = vsub.f32 %v616, %v1065
    %v1067 = vand.u32 %v1066, 4294901760
    %1068 = vmatpush1.msra.mxu0 %v1067
    %1069 = vmatprep.subr.mxu0 0.0
    %v1070 = vand.u32 %v615, 4294901760
    %v1071 = vsub.f32 %v615, %v1070
    %v1072 = vand.u32 %v1071, 4294901760
    %1073 = vmatpush1.msra.mxu0 %v1072
    %1074 = vmatprep.subr.mxu0 0.0
    %v1075 = vand.u32 %v614, 4294901760
    %v1076 = vsub.f32 %v614, %v1075
    %v1077 = vand.u32 %v1076, 4294901760
    %1078 = vmatpush1.msra.mxu0 %v1077
    %1079 = vmatprep.subr.mxu0 0.0
    %v1080 = vand.u32 %v613, 4294901760
    %v1081 = vsub.f32 %v613, %v1080
    %v1082 = vand.u32 %v1081, 4294901760
    %1083 = vmatpush1.msra.mxu0 %v1082
    %1084 = vmatprep.subr.mxu0 0.0
    %v1085 = vand.u32 %v612, 4294901760
    %v1086 = vsub.f32 %v612, %v1085
    %v1087 = vand.u32 %v1086, 4294901760
    %1088 = vmatpush1.msra.mxu0 %v1087
    %1089 = vmatprep.subr.mxu0 0.0
    %v1090 = vand.u32 %v611, 4294901760
    %v1091 = vsub.f32 %v611, %v1090
    %v1092 = vand.u32 %v1091, 4294901760
    %1093 = vmatpush1.msra.mxu0 %v1092
    %1094 = vmatprep.subr.mxu0 0.0
    %1095 = vmatpush2.msra.mxu0 0.0
    %1096 = vmatprep.subr.mxu0 0.0
    %1097 = vmatpush2.msra.mxu0 0.0
    %1098 = vmatprep.subr.mxu0 0.0
    %1099 = vmatpush2.msra.mxu0 0.0
    %1100 = vmatprep.subr.mxu0 0.0
    %1101 = vmatpush2.msra.mxu0 0.0
    %1102 = vmatprep.subr.mxu0 0.0
    %1103 = vmatpush2.msra.mxu0 0.0
    %1104 = vmatprep.subr.mxu0 0.0
    %1105 = vmatpush2.msra.mxu0 0.0
    %1106 = vmatprep.subr.mxu0 0.0
    %1107 = vmatpush2.msra.mxu0 0.0
    %1108 = vmatprep.subr.mxu0 0.0
    %1109 = vmatpush2.msra.mxu0 0.0
    %1110 = vmatprep.subr.mxu0 0.0
    %1111 = vmatpush2.msra.mxu0 0.0
    %1112 = vmatprep.subr.mxu0 0.0
    %1113 = vmatpush2.msra.mxu0 0.0
    %1114 = vmatprep.subr.mxu0 0.0
    %1115 = vmatpush2.msra.mxu0 0.0
    %1116 = vmatprep.subr.mxu0 0.0
    %1117 = vmatpush2.msra.mxu0 0.0
    %1118 = vmatprep.subr.mxu0 0.0
    %1119 = vmatpush2.msra.mxu0 0.0
    %1120 = vmatprep.subr.mxu0 0.0
    %1121 = vmatpush2.msra.mxu0 0.0
    %1122 = vmatprep.subr.mxu0 0.0
    %1123 = vmatpush2.msra.mxu0 0.0
    %1124 = vmatprep.subr.mxu0 0.0
    %1125 = vmatpush2.msra.mxu0 0.0
    %1126 = vmatprep.mubr.f32.mxu0 0.0
    %v1127 = vand.u32 %v625, 4294901760
    %1128 = vmatmul.mubr.f32.gmra.mxu0 %v1127
    %v1129 = vpop.f32.mrf.mxu0
    %v1130 = vadd.f32 %v1023, %v1129
    %v1131 = vpop.f32.mrf.mxu0
    %1132 = vdwg.mxu0
    %1133 = vmatprep.subr.mxu0 0.0
    %1134 = vmatpush1.msra.mxu0 0.0
    %1135 = vmatprep.subr.mxu0 0.0
    %1136 = vmatpush1.msra.mxu0 0.0
    %1137 = vmatprep.subr.mxu0 0.0
    %1138 = vmatpush1.msra.mxu0 0.0
    %1139 = vmatprep.subr.mxu0 0.0
    %1140 = vmatpush1.msra.mxu0 0.0
    %1141 = vmatprep.subr.mxu0 0.0
    %v1142 = vand.u32 %v622, 4294901760
    %1143 = vmatpush1.msra.mxu0 %v1142
    %1144 = vmatprep.subr.mxu0 0.0
    %v1145 = vand.u32 %v621, 4294901760
    %1146 = vmatpush1.msra.mxu0 %v1145
    %1147 = vmatprep.subr.mxu0 0.0
    %v1148 = vand.u32 %v620, 4294901760
    %1149 = vmatpush1.msra.mxu0 %v1148
    %1150 = vmatprep.subr.mxu0 0.0
    %v1151 = vand.u32 %v619, 4294901760
    %1152 = vmatpush1.msra.mxu0 %v1151
    %1153 = vmatprep.subr.mxu0 0.0
    %v1154 = vand.u32 %v618, 4294901760
    %1155 = vmatpush1.msra.mxu0 %v1154
    %1156 = vmatprep.subr.mxu0 0.0
    %v1157 = vand.u32 %v617, 4294901760
    %1158 = vmatpush1.msra.mxu0 %v1157
    %1159 = vmatprep.subr.mxu0 0.0
    %v1160 = vand.u32 %v616, 4294901760
    %1161 = vmatpush1.msra.mxu0 %v1160
    %1162 = vmatprep.subr.mxu0 0.0
    %v1163 = vand.u32 %v615, 4294901760
    %1164 = vmatpush1.msra.mxu0 %v1163
    %1165 = vmatprep.subr.mxu0 0.0
    %v1166 = vand.u32 %v614, 4294901760
    %1167 = vmatpush1.msra.mxu0 %v1166
    %1168 = vmatprep.subr.mxu0 0.0
    %v1169 = vand.u32 %v613, 4294901760
    %1170 = vmatpush1.msra.mxu0 %v1169
    %1171 = vmatprep.subr.mxu0 0.0
    %v1172 = vand.u32 %v612, 4294901760
    %1173 = vmatpush1.msra.mxu0 %v1172
    %1174 = vmatprep.subr.mxu0 0.0
    %v1175 = vand.u32 %v611, 4294901760
    %1176 = vmatpush1.msra.mxu0 %v1175
    %1177 = vmatprep.subr.mxu0 0.0
    %1178 = vmatpush2.msra.mxu0 0.0
    %1179 = vmatprep.subr.mxu0 0.0
    %1180 = vmatpush2.msra.mxu0 0.0
    %1181 = vmatprep.subr.mxu0 0.0
    %1182 = vmatpush2.msra.mxu0 0.0
    %1183 = vmatprep.subr.mxu0 0.0
    %1184 = vmatpush2.msra.mxu0 0.0
    %1185 = vmatprep.subr.mxu0 0.0
    %1186 = vmatpush2.msra.mxu0 0.0
    %1187 = vmatprep.subr.mxu0 0.0
    %1188 = vmatpush2.msra.mxu0 0.0
    %1189 = vmatprep.subr.mxu0 0.0
    %1190 = vmatpush2.msra.mxu0 0.0
    %1191 = vmatprep.subr.mxu0 0.0
    %1192 = vmatpush2.msra.mxu0 0.0
    %1193 = vmatprep.subr.mxu0 0.0
    %1194 = vmatpush2.msra.mxu0 0.0
    %1195 = vmatprep.subr.mxu0 0.0
    %1196 = vmatpush2.msra.mxu0 0.0
    %1197 = vmatprep.subr.mxu0 0.0
    %1198 = vmatpush2.msra.mxu0 0.0
    %1199 = vmatprep.subr.mxu0 0.0
    %1200 = vmatpush2.msra.mxu0 0.0
    %1201 = vmatprep.subr.mxu0 0.0
    %1202 = vmatpush2.msra.mxu0 0.0
    %1203 = vmatprep.subr.mxu0 0.0
    %1204 = vmatpush2.msra.mxu0 0.0
    %1205 = vmatprep.subr.mxu0 0.0
    %1206 = vmatpush2.msra.mxu0 0.0
    %1207 = vmatprep.subr.mxu0 0.0
    %1208 = vmatpush2.msra.mxu0 0.0
    %1209 = vmatprep.mubr.f32.mxu0 0.0
    %v1210 = vand.u32 %v625, 4294901760
    %1211 = vmatmul.mubr.f32.gmra.mxu0 %v1210
    %v1212 = vpop.f32.mrf.mxu0
    %v1213 = vadd.f32 %v1130, %v1212
    %v1214 = vpop.f32.mrf.mxu0
    %1215 = vdwg.mxu0
    %v1216 = vmul.f32 %v608, %v1213
    %1217 = vadd.xlane.f32.xlu0 %v1216
    %v1218 = vpop.xlane.xlu0 %1217
    %v1220 = vlaneseq
    %v1221 = vshrl.u32 %v1220, 7
    %v1222 = vsub.s32 %v49, %v1221
    %v1223 = vrot.slane %v1218, %v1222
    %vm1225 = vcmask 57344
    %1226 = vst.msk [vmem:[#allocation7] sm:$0x1] %vm1225, %v1223
    // Predicated region
    $region26: #{tpu_custom_call.1} parent=1 // pred_check
      _
    $region27: #{tpu_custom_call.1} parent=1 // pred_check_branch
      %1228 = sbr.rel (0) target = $region29
    $region28: #{tpu_custom_call.1} parent=1 // pred_region
      %s1230 = ssub.s32 16, 16
      %1231 = vsyncadd [#allocation4], %s1230
      %s1233 = sshll.u32 [#allocation7], 4
      %s1234 = int_to_ptr.vmem [resolvable:$true] %s1233
      %1236 = dma.vmem_to_hbm [thread:$0]  %s1234, 16, %s4, [#allocation4]
    $region29: #{tpu_custom_call.1} parent=1 // pred_fallthru
      _
    // Predicated region
    $region30: #{tpu_custom_call.1} parent=1 // pred_check
      _
    $region31: #{tpu_custom_call.1} parent=1 // pred_check_branch
      %1238 = sbr.rel (0) target = $region33
    $region32: #{tpu_custom_call.1} parent=1 // pred_region
      %1239 = dma.done [#allocation4], 16
    $region33: #{tpu_custom_call.1} parent=1 // pred_fallthru
      _
    %1240 = vsyncpa [#allocation3], 1
    %1241 = vsyncpa [#allocation6], 1
    %1242 = vsyncpa [#allocation4], 1

</llo_original>
